<compile_context>
chip_gen: v7x
topology: tpu7x:2x2x1
jax: 0.10.0
libtpu: 0.0.40
codegen_flags: <defaults>
</compile_context>

<pallas_src>
import math

import jax
import jax.numpy as jnp
from jax import lax
from jax.experimental import pallas as pl
from jax.experimental.pallas import tpu as pltpu


def _cdiv(a: int, b: int) -> int:
    return -(-a // b)


def _round_up(x: int, m: int) -> int:
    return ((x + m - 1) // m) * m


def _choose_tile_rows(rows: int, gdim: int) -> int:
    """Grouped-row tile: multiple of 8, bounded by a VMEM byte budget that is
    safe for v5e's 16 MiB default scoped VMEM (v6e/v7x default to 32 MiB), and
    chosen so the (parallel) batch axis gets >= 2 grid steps when possible."""
    # ~3 MiB per output block => 2 pipeline buffers + ~2 temporaries <= ~12 MiB.
    max_rows = max(8, (((3 << 20) // (4 * gdim)) // 8) * 8)
    if rows <= 8:
        return 8
    target = _round_up(_cdiv(rows, 2), 8)      # aim for grid >= 2 (v7x megacore)
    return min(target, max_rows)


def _make_kernel(dim: int, half_dim: int, g: int):
    gdim = g * dim
    neg_scale = -(math.log(10000.0) / (half_dim - 1))
    half_pi = math.pi / 2.0

    def kernel(t_ref, out_ref):
        # t_ref  : (TBG, g)     float32 — g consecutive batch timesteps per row
        # out_ref: (TBG, g*dim) float32 — g embeddings per row (lane-dense)
        col = lax.broadcasted_iota(jnp.int32, (1, gdim), 1)

        # k = col % dim without vector integer div/mod (where-chain, g is tiny).
        k = col
        for j in range(1, g):
            k = jnp.where(col >= j * dim, col - j * dim, k)

        is_sin = k < half_dim
        f_idx = jnp.where(is_sin, k, k - half_dim).astype(jnp.float32)
        freqs_ext = jnp.exp(f_idx * neg_scale)                     # (1, gdim)
        phase = jnp.where(is_sin, jnp.float32(0.0), jnp.float32(half_pi))

        if g == 1:
            t_b = t_ref[...]                                       # (TBG, 1)
        else:
            # Broadcast each grouped time column across its dim-wide lane block
            # (pure VPU mask-multiply-add; MXU/XLU not needed).
            def term(j):
                in_grp = (col >= j * dim) & (col < (j + 1) * dim)  # (1, gdim)
                return t_ref[:, j:j + 1] * in_grp.astype(jnp.float32)
            t_b = term(0)
            for j in range(1, g):
                t_b = t_b + term(j)

        # cos(x) == sin(x + pi/2): one transcendental pass, no concat relayout,
        # one full-width lane-dense store.
        out_ref[...] = jnp.sin(t_b * freqs_ext + phase)

    return kernel


def sinusoidal_position_embeddings(time: jax.Array, dim: int) -> jax.Array:
    """time: (B,) timesteps. Returns (B, dim) float32 [sin | cos] embeddings."""
    if dim % 2 != 0:
        raise ValueError("dim must be even (PyTorch module assumes this)")
    half_dim = dim // 2
    if half_dim < 2:
        raise ValueError("dim must be >= 4 (avoids log(10000)/0)")

    # Fold g batch rows into one output row so stores are >= 128 lanes wide.
    g = (128 // dim) if (dim < 128 and 128 % dim == 0) else 1
    gdim = g * dim

    t = jnp.asarray(time, dtype=jnp.float32).reshape(-1)
    b = t.shape[0]

    rows = _cdiv(b, g)                         # grouped rows needed
    tile = _choose_tile_rows(rows, gdim)
    rows_pad = _round_up(rows, tile)
    b_pad = rows_pad * g
    if b_pad != b:
        t = jnp.pad(t, (0, b_pad - b))
    t_grouped = t.reshape(rows_pad, g)

    out_grouped = pl.pallas_call(
        _make_kernel(dim, half_dim, g),
        out_shape=jax.ShapeDtypeStruct((rows_pad, gdim), jnp.float32),
        grid=(rows_pad // tile,),
        in_specs=[pl.BlockSpec((tile, g), lambda i: (i, 0))],
        out_specs=pl.BlockSpec((tile, gdim), lambda i: (i, 0)),
        compiler_params=pltpu.CompilerParams(
            dimension_semantics=("parallel",),          # shard batch on v7x TCs
        ),
        cost_estimate=pl.CostEstimate(
            flops=2 * b_pad * dim,
            transcendentals=b_pad * dim,
            bytes_accessed=4 * b_pad * (dim + 1),
        ),
    )(t_grouped)

    # Free row-major reshape back to (B_pad, dim); drop padded rows.
    return out_grouped.reshape(b_pad, dim)[:b]


def _reference(time: jax.Array, dim: int) -> jax.Array:
    """Pure-JAX mirror of the PyTorch forward pass."""
    half_dim = dim // 2
    scale = math.log(10000.0) / (half_dim - 1)
    freqs = jnp.exp(jnp.arange(half_dim, dtype=jnp.float32) * -scale)
    arg = time.astype(jnp.float32)[:, None] * freqs[None, :]
    return jnp.concatenate([jnp.sin(arg), jnp.cos(arg)], axis=-1)


if __name__ == "__main__":
    key = jax.random.PRNGKey(0)

    # Config 1: the module's typical use (diffusion timesteps 0..999),
    # dim < 128 so the lane-dense grouped path (g = 4) is exercised.
    batch, dim = 8, 32
    time = jax.random.randint(key, (batch,), 0, 1000).astype(jnp.float32)
    out = jax.block_until_ready(sinusoidal_position_embeddings(time, dim))
    ref = _reference(time, dim)
    assert out.shape == (batch, dim), out.shape
    # Tolerance covers TPU transcendental approximation differences
    # (sin(x + pi/2) vs cos(x), in-kernel exp) for args up to ~1e3.
    assert jnp.allclose(out, ref, atol=2e-3, rtol=1e-3), "mismatch vs reference"

    # Config 2: B not a multiple of the group/tile (padding path), g = 2, grid = 2.
    batch2, dim2 = 21, 64
    time2 = jax.random.randint(jax.random.PRNGKey(1), (batch2,), 0, 1000).astype(
        jnp.float32
    )
    out2 = jax.block_until_ready(sinusoidal_position_embeddings(time2, dim2))
    ref2 = _reference(time2, dim2)
    assert out2.shape == (batch2, dim2), out2.shape
    assert jnp.allclose(out2, ref2, atol=2e-3, rtol=1e-3), "mismatch (grouped/padded)"

    # Config 3: dim >= 128 path (g = 1, output already lane-dense).
    batch3, dim3 = 20, 128
    time3 = jax.random.randint(jax.random.PRNGKey(2), (batch3,), 0, 1000).astype(
        jnp.float32
    )
    out3 = jax.block_until_ready(sinusoidal_position_embeddings(time3, dim3))
    ref3 = _reference(time3, dim3)
    assert out3.shape == (batch3, dim3), out3.shape
    assert jnp.allclose(out3, ref3, atol=2e-3, rtol=1e-3), "mismatch (g=1 path)"

    print("KERNEL_OK")
</pallas_src>

<mosaic_0001>
module attributes {stable_mosaic.version = 11 : i64} {
  func.func @kernel(%arg0: i32, %arg1: memref<8x4xf32, #tpu.memory_space<vmem>>, %arg2: memref<8x128xf32, #tpu.memory_space<vmem>>) attributes {dimension_semantics = [#tpu.dimension_semantics<parallel>], iteration_bounds = array<i64: 1>, scalar_prefetch = 0 : i64, scratch_operands = 0 : i64, tpu.core_type = #tpu.core_type<tc>, window_params = [{transform_indices = @transform_0, window_bounds = array<i64: 8, 4>}, {transform_indices = @transform_1, window_bounds = array<i64: 8, 128>}]} {
    %0 = tpu.iota {dimensions = array<i32: 1>} : vector<1x128xi32>
    %c32_i32 = arith.constant 32 : i32
    %1 = vector.broadcast %c32_i32 : i32 to vector<1x128xi32>
    %2 = arith.cmpi sge, %0, %1 : vector<1x128xi32>
    %c32_i32_0 = arith.constant 32 : i32
    %3 = vector.broadcast %c32_i32_0 : i32 to vector<1x128xi32>
    %4 = arith.subi %0, %3 : vector<1x128xi32>
    %5 = arith.select %2, %4, %0 : vector<1x128xi1>, vector<1x128xi32>
    %c64_i32 = arith.constant 64 : i32
    %6 = vector.broadcast %c64_i32 : i32 to vector<1x128xi32>
    %7 = arith.cmpi sge, %0, %6 : vector<1x128xi32>
    %c64_i32_1 = arith.constant 64 : i32
    %8 = vector.broadcast %c64_i32_1 : i32 to vector<1x128xi32>
    %9 = arith.subi %0, %8 : vector<1x128xi32>
    %10 = arith.select %7, %9, %5 : vector<1x128xi1>, vector<1x128xi32>
    %c96_i32 = arith.constant 96 : i32
    %11 = vector.broadcast %c96_i32 : i32 to vector<1x128xi32>
    %12 = arith.cmpi sge, %0, %11 : vector<1x128xi32>
    %c96_i32_2 = arith.constant 96 : i32
    %13 = vector.broadcast %c96_i32_2 : i32 to vector<1x128xi32>
    %14 = arith.subi %0, %13 : vector<1x128xi32>
    %15 = arith.select %12, %14, %10 : vector<1x128xi1>, vector<1x128xi32>
    %c16_i32 = arith.constant 16 : i32
    %16 = vector.broadcast %c16_i32 : i32 to vector<1x128xi32>
    %17 = arith.cmpi slt, %15, %16 : vector<1x128xi32>
    %c16_i32_3 = arith.constant 16 : i32
    %18 = vector.broadcast %c16_i32_3 : i32 to vector<1x128xi32>
    %19 = arith.subi %15, %18 : vector<1x128xi32>
    %20 = arith.select %17, %15, %19 : vector<1x128xi1>, vector<1x128xi32>
    %21 = arith.sitofp %20 : vector<1x128xi32> to vector<1x128xf32>
    %cst = arith.constant -0.614022672 : f32
    %22 = vector.broadcast %cst : f32 to vector<1x128xf32>
    %23 = arith.mulf %21, %22 : vector<1x128xf32>
    %24 = math.exp %23 : vector<1x128xf32>
    %cst_4 = arith.constant 0.000000e+00 : f32
    %cst_5 = arith.constant 1.57079637 : f32
    %25 = vector.broadcast %cst_4 : f32 to vector<1x128xf32>
    %26 = vector.broadcast %cst_5 : f32 to vector<1x128xf32>
    %27 = arith.select %17, %25, %26 : vector<1x128xi1>, vector<1x128xf32>
    %c0_i32 = arith.constant 0 : i32
    %28 = vector.broadcast %c0_i32 : i32 to vector<1x128xi32>
    %29 = arith.cmpi sge, %0, %28 : vector<1x128xi32>
    %c32_i32_6 = arith.constant 32 : i32
    %30 = vector.broadcast %c32_i32_6 : i32 to vector<1x128xi32>
    %31 = arith.cmpi slt, %0, %30 : vector<1x128xi32>
    %32 = arith.andi %29, %31 : vector<1x128xi1>
    %c0 = arith.constant 0 : index
    %c0_7 = arith.constant 0 : index
    %33 = vector.load %arg1[%c0, %c0_7] : memref<8x4xf32, #tpu.memory_space<vmem>>, vector<8x1xf32>
    %34 = arith.extui %32 : vector<1x128xi1> to vector<1x128xi32>
    %35 = arith.sitofp %34 : vector<1x128xi32> to vector<1x128xf32>
    %36 = vector.broadcast %33 : vector<8x1xf32> to vector<8x128xf32>
    %37 = vector.broadcast %35 : vector<1x128xf32> to vector<8x128xf32>
    %38 = arith.mulf %36, %37 : vector<8x128xf32>
    %c32_i32_8 = arith.constant 32 : i32
    %39 = vector.broadcast %c32_i32_8 : i32 to vector<1x128xi32>
    %40 = arith.cmpi sge, %0, %39 : vector<1x128xi32>
    %c64_i32_9 = arith.constant 64 : i32
    %41 = vector.broadcast %c64_i32_9 : i32 to vector<1x128xi32>
    %42 = arith.cmpi slt, %0, %41 : vector<1x128xi32>
    %43 = arith.andi %40, %42 : vector<1x128xi1>
    %c0_10 = arith.constant 0 : index
    %c1 = arith.constant 1 : index
    %44 = vector.load %arg1[%c0_10, %c1] : memref<8x4xf32, #tpu.memory_space<vmem>>, vector<8x1xf32>
    %45 = arith.extui %43 : vector<1x128xi1> to vector<1x128xi32>
    %46 = arith.sitofp %45 : vector<1x128xi32> to vector<1x128xf32>
    %47 = vector.broadcast %44 : vector<8x1xf32> to vector<8x128xf32>
    %48 = vector.broadcast %46 : vector<1x128xf32> to vector<8x128xf32>
    %49 = arith.mulf %47, %48 : vector<8x128xf32>
    %50 = arith.addf %38, %49 : vector<8x128xf32>
    %c64_i32_11 = arith.constant 64 : i32
    %51 = vector.broadcast %c64_i32_11 : i32 to vector<1x128xi32>
    %52 = arith.cmpi sge, %0, %51 : vector<1x128xi32>
    %c96_i32_12 = arith.constant 96 : i32
    %53 = vector.broadcast %c96_i32_12 : i32 to vector<1x128xi32>
    %54 = arith.cmpi slt, %0, %53 : vector<1x128xi32>
    %55 = arith.andi %52, %54 : vector<1x128xi1>
    %c0_13 = arith.constant 0 : index
    %c2 = arith.constant 2 : index
    %56 = vector.load %arg1[%c0_13, %c2] : memref<8x4xf32, #tpu.memory_space<vmem>>, vector<8x1xf32>
    %57 = arith.extui %55 : vector<1x128xi1> to vector<1x128xi32>
    %58 = arith.sitofp %57 : vector<1x128xi32> to vector<1x128xf32>
    %59 = vector.broadcast %56 : vector<8x1xf32> to vector<8x128xf32>
    %60 = vector.broadcast %58 : vector<1x128xf32> to vector<8x128xf32>
    %61 = arith.mulf %59, %60 : vector<8x128xf32>
    %62 = arith.addf %50, %61 : vector<8x128xf32>
    %c96_i32_14 = arith.constant 96 : i32
    %63 = vector.broadcast %c96_i32_14 : i32 to vector<1x128xi32>
    %64 = arith.cmpi sge, %0, %63 : vector<1x128xi32>
    %c128_i32 = arith.constant 128 : i32
    %65 = vector.broadcast %c128_i32 : i32 to vector<1x128xi32>
    %66 = arith.cmpi slt, %0, %65 : vector<1x128xi32>
    %67 = arith.andi %64, %66 : vector<1x128xi1>
    %c0_15 = arith.constant 0 : index
    %c3 = arith.constant 3 : index
    %68 = vector.load %arg1[%c0_15, %c3] : memref<8x4xf32, #tpu.memory_space<vmem>>, vector<8x1xf32>
    %69 = arith.extui %67 : vector<1x128xi1> to vector<1x128xi32>
    %70 = arith.sitofp %69 : vector<1x128xi32> to vector<1x128xf32>
    %71 = vector.broadcast %68 : vector<8x1xf32> to vector<8x128xf32>
    %72 = vector.broadcast %70 : vector<1x128xf32> to vector<8x128xf32>
    %73 = arith.mulf %71, %72 : vector<8x128xf32>
    %74 = arith.addf %62, %73 : vector<8x128xf32>
    %75 = vector.broadcast %24 : vector<1x128xf32> to vector<8x128xf32>
    %76 = arith.mulf %74, %75 : vector<8x128xf32>
    %77 = vector.broadcast %27 : vector<1x128xf32> to vector<8x128xf32>
    %78 = arith.addf %76, %77 : vector<8x128xf32>
    %79 = math.sin %78 : vector<8x128xf32>
    %c0_16 = arith.constant 0 : index
    %c0_17 = arith.constant 0 : index
    %80 = vector.load %arg2[%c0_16, %c0_17] : memref<8x128xf32, #tpu.memory_space<vmem>>, vector<8x128xf32>
    tpu.vector_store %arg2[%c0_16, %c0_17], %79 {strides = array<i32>} : memref<8x128xf32, #tpu.memory_space<vmem>>, vector<8x128xf32>,
    return
  }
  func.func @transform_0(%arg0: i32) -> (i32, i32) {
    %c0_i32 = arith.constant 0 : i32
    %c0_i32_0 = arith.constant 0 : i32
    return %arg0, %c0_i32 : i32, i32
  }
  func.func @transform_1(%arg0: i32) -> (i32, i32) {
    %c0_i32 = arith.constant 0 : i32
    %c0_i32_0 = arith.constant 0 : i32
    return %arg0, %c0_i32 : i32, i32
  }
}

</mosaic_0001>

<llo_original>
// kernel: tpu_custom_call.1
$region0: #{tpu_custom_call.1}
  #allocation0 [shape = 'u32[]', space=smem, size = 0x4, offset = 0x4, fixed_abs, tag = 'smem constant byte address 0x4 - core index']
  #allocation1 [shape = 'u32[144,128]{1,0:T(1,128)}', space=vmem, size = 0x12000, scoped, tag = 'internal scratch']
  %s0 = inlined_call_operand.vmem [shape: f32[8,4], index: 0, kind: input, shape index: {}]
  %s1 = inlined_call_operand.hbm [shape: f32[8,128], index: 1, kind: output, shape index: {}]
  %s2 = sld [smem:[#allocation0]]
  $region14: #{tpu_custom_call.1} parent=0
    _
  %s4 = ssub.s32 1, %s2
  %s5 = scalar_select 0, %s4, %s2
  $region1: #{tpu_custom_call.1} parent=0
    #allocation2 [shape = 'u8[4096]{0}', space=vmem, size = 0x1000, scoped, tag = 'output window, operand 0, single buffered']
    #allocation3 [shape = 's32[1]{0}', space=sflag, size = 0x4, scoped, tag = 'scoped memory for tpu_custom_call.1']
    %6 = vsyncpa [#allocation3], 0
    // Predicated region
    $region2: #{tpu_custom_call.1} parent=1 // pred_check
      _
    $region3: #{tpu_custom_call.1} parent=1 // pred_check_branch
      %8 = sbr.rel (0) target = $region5
    $region4: #{tpu_custom_call.1} parent=1 // pred_region
      _
    $region5: #{tpu_custom_call.1} parent=1 // pred_fallthru
      _
    %v9 = vlaneseq
    %v10 = vand.u32 %v9, 127
    %vm11 = vcmp.ge.s32.totalorder %v10, 32
    %v12 = vsub.s32 %v10, 32
    %v13 = vsel %vm11, %v12, %v10
    %vm14 = vcmp.ge.s32.totalorder %v10, 64
    %v15 = vsub.s32 %v10, 64
    %v16 = vsel %vm14, %v15, %v13
    %vm17 = vcmp.ge.s32.totalorder %v10, 96
    %v18 = vsub.s32 %v10, 96
    %v19 = vsel %vm17, %v18, %v16
    %vm20 = vcmp.lt.s32.totalorder %v19, 16
    %v21 = vsub.s32 %v19, 16
    %v22 = vsel %vm20, %v19, %v21
    %v23 = vcvt.s32.f32 %v22
    %v24 = vmul.f32 %v23, -0.6140227
    %v25 = vmul.f32 %v24, 1.442695
    %v26 = vpow.pop %v25
    %v27 = vsel %vm20, 0.0, 1.5707964
    %vm28 = vcmp.ge.s32.totalorder %v10, 0
    %vm29 = vcmp.lt.s32.totalorder %v10, 32
    %vm30 = vmand %vm28, %vm29
    %v31 = vld [vmem:[%s0] sm:$0xff]
    %v32 = vsel %vm30, 1, 0
    %v33 = vcvt.s32.f32 %v32
    %35 = vset.pattern.permute.xlu0 0
    %36 = vperm.xlu0 %35, %v31
    %v37 = vpop.permute.xlu0 %36
    %v39 = vmul.f32 %v37, %v33
    %vm40 = vcmp.lt.s32.totalorder %v10, 64
    %vm41 = vmand %vm11, %vm40
    %v42 = vsel %vm41, 1, 0
    %v43 = vcvt.s32.f32 %v42
    %44 = vset.pattern.permute.xlu0 1
    %45 = vperm.xlu0 %44, %v31
    %v46 = vpop.permute.xlu0 %45
    %v48 = vmul.f32 %v46, %v43
    %v49 = vadd.f32 %v39, %v48
    %vm50 = vcmp.lt.s32.totalorder %v10, 96
    %vm51 = vmand %vm14, %vm50
    %v52 = vsel %vm51, 1, 0
    %v53 = vcvt.s32.f32 %v52
    %54 = vset.pattern.permute.xlu0 2
    %55 = vperm.xlu0 %54, %v31
    %v56 = vpop.permute.xlu0 %55
    %v58 = vmul.f32 %v56, %v53
    %v59 = vadd.f32 %v49, %v58
    %vm60 = vcmp.lt.s32.totalorder %v10, 128
    %vm61 = vmand %vm17, %vm60
    %v62 = vsel %vm61, 1, 0
    %v63 = vcvt.s32.f32 %v62
    %64 = vset.pattern.permute.xlu0 3
    %65 = vperm.xlu0 %64, %v31
    %v66 = vpop.permute.xlu0 %65
    %v68 = vmul.f32 %v66, %v63
    %v69 = vadd.f32 %v59, %v68
    %v70 = vmul.f32 %v69, %v26
    %v71 = vadd.f32 %v70, %v27
    %v72 = vand.u32 2147483647, %v71
    %vm73 = vcmp.le.f32.partialorder %v72, 0.7853982
    %vm74 = vcmp.lt.s32.totalorder %v71, 0
    %v75 = vand.u32 %v71, 2139095040
    %v76 = vshrl.u32 %v75, 23
    %v77 = vsub.s32 %v76, 127
    %v78 = vand.u32 2147483647, %v71
    %v79 = vand.u32 %v78, 8388607
    %v80 = vor.u32 %v79, 8388608
    %v81 = vsub.s32 0, %v80
    %v82 = vadd.s32 %v77, 1
    %vm83 = vcmp.gt.s32.totalorder %v82, 0
    %v84 = vsel %vm83, %v82, 0
    %v85 = vshrl.u32 %v84, 5
    %v86 = vand.u32 %v84, 31
    %v87 = vsub.s32 32, %v86
    %v88 = vshrl.u32 683565275, %v87
    %v89 = vshll.u32 683565275, %v86
    %v90 = vshrl.u32 2475754826, %v87
    %v91 = vor.u32 %v89, %v90
    %v92 = vshll.u32 2475754826, %v86
    %v93 = vshrl.u32 2131351028, %v87
    %v94 = vor.u32 %v92, %v93
    %v95 = vshll.u32 2131351028, %v86
    %v96 = vshrl.u32 2102212464, %v87
    %v97 = vor.u32 %v95, %v96
    %v98 = vshll.u32 2102212464, %v86
    %v99 = vshrl.u32 920167782, %v87
    %v100 = vor.u32 %v98, %v99
    %v101 = vshll.u32 920167782, %v86
    %v102 = vshrl.u32 1326507024, %v87
    %v103 = vor.u32 %v101, %v102
    %vm104 = vcmp.lt.s32.totalorder %v85, 1
    %vm105 = vcmp.lt.s32.totalorder %v85, 2
    %vm106 = vcmp.lt.s32.totalorder %v85, 3
    %vm107 = vcmp.lt.s32.totalorder %v85, 4
    %v108 = vsel %vm104, %v88, %v91
    %v109 = vsel %vm107, %v97, 2102212464
    %v110 = vsel %vm106, %v94, %v109
    %v111 = vsel %vm105, %v108, %v110
    %v112 = vsel %vm104, %v91, %v94
    %v113 = vsel %vm107, %v100, 920167782
    %v114 = vsel %vm106, %v97, %v113
    %v115 = vsel %vm105, %v112, %v114
    %v116 = vsel %vm104, %v94, %v97
    %v117 = vsel %vm107, %v103, 1326507024
    %v118 = vsel %vm106, %v100, %v117
    %v119 = vsel %vm105, %v116, %v118
    %v120 = vshll.u32 %v80, 8
    %v121 = vmul.u32.u64.compose %v120, %v119
    %v122 = vextract.low.u32 %v121
    %v123 = vextract.high.u32 %v121
    %v124 = vmul.u32.u64.compose %v120, %v115
    %v125 = vextract.low.u32 %v124
    %v126 = vextract.high.u32 %v124
    %v127 = vmul.u32 %v120, %v111
    %v128 = vadd.s32 %v123, %v125
    %vm129 = vc.u32 %v123, %v125
    %v130 = vadd.s32 %v126, 1
    %v131 = vsel %vm129, %v130, %v126
    %v132 = vadd.s32 %v127, %v131
    %v133 = vadd.s32 %v132, 536870912
    %v134 = vshrl.u32 %v133, 30
    %v135 = vshll.u32 %v134, 30
    %v136 = vsub.s32 %v132, %v135
    %vm137 = vcmp.lt.s32.totalorder %v136, 0
    %v138 = vsub.s32 0, %v136
    %v139 = vsel %vm137, %v138, %v136
    %v140 = vclz %v139
    %v141 = vsub.s32 %v140, 2
    %vm142 = vcmp.gt.s32.totalorder 0, %v141
    %v143 = vsel %vm142, 0, %v141
    %v144 = vsub.s32 32, %v143
    %v145 = vshll.u32 %v136, %v143
    %v146 = vshrl.u32 %v128, %v144
    %v147 = vor.u32 %v145, %v146
    %v148 = vsub.s32 4294967266, %v143
    %v149 = vadd.s32 %v148, 127
    %v150 = vshll.u32 %v149, 23
    %v151 = vor.u32 4788187, %v150
    %v152 = vand.u32 2147483647, %v151
    %v154 = vcvt.s32.f32 %v147
    %v155 = vmul.f32 %v154, %v152
    %v156 = vxor.u32 %v155, 2147483648
    %v157 = vsel %vm74, %v156, %v155
    %v158 = vsub.s32 4, %v134
    %v159 = vsel %vm74, %v158, %v134
    %v160 = vsel %vm73, %v71, %v157
    %v161 = vsel %vm73, 0, %v159
    %v162 = vcosq.f32.pop %v160
    %v163 = vsinq.f32.pop %v160
    %vm164 = vweird.f32 %v71
    %v165 = vadd.s32 %v161, 3
    %v166 = vand.u32 %v165, 3
    %vm167 = vcmp.lt.s32.totalorder %v166, 2
    %vm168 = vcmp.eq.s32.totalorder %v166, 0
    %v169 = vxor.u32 %v163, 2147483648
    %v170 = vsel %vm168, %v162, %v169
    %vm171 = vcmp.eq.s32.totalorder %v166, 2
    %v172 = vxor.u32 %v162, 2147483648
    %v173 = vsel %vm171, %v172, %v163
    %v174 = vsel %vm167, %v170, %v173
    %v175 = vsel %vm164, nan, %v174
    %176 = vst [vmem:[#allocation2] sm:$0xff] %v175
    // Predicated region
    $region6: #{tpu_custom_call.1} parent=1 // pred_check
      _
    $region7: #{tpu_custom_call.1} parent=1 // pred_check_branch
      %178 = sbr.rel (0) target = $region9
    $region8: #{tpu_custom_call.1} parent=1 // pred_region
      %s180 = ssub.s32 128, 128
      %181 = vsyncadd [#allocation3], %s180
      %s183 = sshll.u32 [#allocation2], 4
      %s184 = int_to_ptr.vmem [resolvable:$true] %s183
      %186 = dma.vmem_to_hbm [thread:$0]  %s184, 128, %s1, [#allocation3]
    $region9: #{tpu_custom_call.1} parent=1 // pred_fallthru
      _
    // Predicated region
    $region10: #{tpu_custom_call.1} parent=1 // pred_check
      _
    $region11: #{tpu_custom_call.1} parent=1 // pred_check_branch
      %188 = sbr.rel (0) target = $region13
    $region12: #{tpu_custom_call.1} parent=1 // pred_region
      %189 = dma.done [#allocation3], 128
    $region13: #{tpu_custom_call.1} parent=1 // pred_fallthru
      _
    %190 = vsyncpa [#allocation3], 1

</llo_original>
